<compile_context>
chip_gen: v6e
topology: v6e:2x2x1
jax: 0.10.0
libtpu: 0.0.40
codegen_flags: <defaults>
</compile_context>

<pallas_src>
import jax
import jax.numpy as jnp
from jax.experimental import pallas as pl
from jax.experimental.pallas import tpu as pltpu

K_LOGICAL = 1000   # PyTorch fc1 in_features
K_PADDED = 1024    # padded to a multiple of 128 for clean MXU K passes


def _leaky_relu(x, negative_slope=0.01):
    # Matches torch.nn.functional.leaky_relu default slope.
    return jnp.where(x >= 0, x, negative_slope * x)


def snow_mlp_kernel(x_ref, w1_ref, b1_ref, w2_ref, b2_ref, wf_ref, bf_ref, o_ref):
    # x_ref : (TM, Kp)   bf16   (batch tile on sublanes, padded features on lanes)
    # w1_ref: (Kp, S)    bf16   b1_ref: (1, S)    f32
    # w2_ref: (S, half)  bf16   b2_ref: (1, half) f32
    # wf_ref: (half, 1)  f32    bf_ref: (1, 1)    f32 (SMEM scalar)
    # o_ref : (1, TM)    f32    (lane-dense output, batch on lanes)

    # Layer 1: bf16 MXU matmul, f32 accumulate.
    h1 = jnp.dot(x_ref[...], w1_ref[...],
                 preferred_element_type=jnp.float32) + b1_ref[...]
    h1 = _leaky_relu(h1).astype(jnp.bfloat16)

    # Layer 2: bf16 MXU matmul, f32 accumulate.
    h2 = jnp.dot(h1, w2_ref[...],
                 preferred_element_type=jnp.float32) + b2_ref[...]
    h2 = _leaky_relu(h2)                                   # (TM, half) f32

    # Final Linear(half -> 1): a 1-column MXU matmul would waste a full MXU
    # push/pop, so do it on the VPU/XLU instead and land it lane-dense:
    #   transpose h2 -> (half, TM), scale rows by wf, reduce over sublanes.
    prod = h2.T * wf_ref[...]                              # (half, TM) * (half, 1)
    out_row = jnp.sum(prod, axis=0, keepdims=True) + bf_ref[0, 0]   # (1, TM)
    o_ref[...] = out_row.astype(o_ref.dtype)


def snow_classifier_forward(x, params, *, block_b=128):
    """x: (B, 1000) float32. Returns (B,) float32, matching x.squeeze(1)."""
    w1, b1, w2, b2, wf, bf = params
    B, K = x.shape
    Kp = w1.shape[0]
    S = w1.shape[1]
    half = w2.shape[1]

    # Zero-pad the contraction dim (exact: zero rows of w1 contribute nothing).
    if K < Kp:
        x = jnp.pad(x, ((0, 0), (0, Kp - K)))
    x = x.astype(jnp.bfloat16)

    # Batch tiling: one block if small, else 128-row tiles (pad B up).
    TM = block_b if B > block_b else B
    Bp = ((B + TM - 1) // TM) * TM
    if Bp != B:
        x = jnp.pad(x, ((0, Bp - B), (0, 0)))
    grid = (Bp // TM,)

    out = pl.pallas_call(
        snow_mlp_kernel,
        out_shape=jax.ShapeDtypeStruct((1, Bp), jnp.float32),
        grid_spec=pltpu.PrefetchScalarGridSpec(
            num_scalar_prefetch=0,
            grid=grid,
            in_specs=[
                # x tile streams with the grid; everything else is resident.
                pl.BlockSpec((TM, Kp), lambda i: (i, 0)),
                pl.BlockSpec((Kp, S), lambda i: (0, 0)),
                pl.BlockSpec((1, S), lambda i: (0, 0)),
                pl.BlockSpec((S, half), lambda i: (0, 0)),
                pl.BlockSpec((1, half), lambda i: (0, 0)),
                pl.BlockSpec((half, 1), lambda i: (0, 0)),
                pl.BlockSpec(memory_space=pltpu.MemorySpace.SMEM),  # bf scalar
            ],
            out_specs=pl.BlockSpec((1, TM), lambda i: (0, i)),      # lane-dense
        ),
        compiler_params=pltpu.CompilerParams(
            dimension_semantics=("parallel",)),   # both TCs on v7x
    )(x, w1, b1, w2, b2, wf, bf)

    return out[0, :B]  # squeeze(1)


def init_params(key, fc_size=64):
    """Deterministic synthetic init (PyTorch Linear-style uniform).

    Weights stored pre-transposed as (in, out); fc1 rows zero-padded to K_PADDED;
    matmul weights in bf16, biases and the tiny final layer in f32."""
    size = fc_size
    half = size // 2
    ks = jax.random.split(key, 6)

    def uniform(k, shape, fan_in):
        bound = 1.0 / jnp.sqrt(fan_in)
        return jax.random.uniform(k, shape, jnp.float32, -bound, bound)

    w1 = uniform(ks[0], (K_LOGICAL, size), K_LOGICAL)
    w1 = jnp.pad(w1, ((0, K_PADDED - K_LOGICAL), (0, 0))).astype(jnp.bfloat16)
    b1 = uniform(ks[1], (1, size), K_LOGICAL)

    w2 = uniform(ks[2], (size, half), size).astype(jnp.bfloat16)
    b2 = uniform(ks[3], (1, half), size)

    wf = uniform(ks[4], (half, 1), half)   # f32: used on the VPU, not the MXU
    bf = uniform(ks[5], (1, 1), half)      # f32 scalar, lives in SMEM
    return (w1, b1, w2, b2, wf, bf)


def reference_forward(x, params):
    """Plain-JAX reference mirroring the kernel math (bf16 matmuls, f32 accum)."""
    w1, b1, w2, b2, wf, bf = params
    Kp = w1.shape[0]
    xb = jnp.pad(x, ((0, 0), (0, Kp - x.shape[1]))).astype(jnp.bfloat16)
    h1 = jnp.dot(xb, w1, preferred_element_type=jnp.float32) + b1
    h1 = jnp.where(h1 >= 0, h1, 0.01 * h1).astype(jnp.bfloat16)
    h2 = jnp.dot(h1, w2, preferred_element_type=jnp.float32) + b2
    h2 = jnp.where(h2 >= 0, h2, 0.01 * h2)
    return (h2 @ wf)[:, 0] + bf[0, 0]


if __name__ == "__main__":
    # TODO(synk): getFeatures=True branch (pretrained torchvision resnet50
    # backbone) is out of scope; only the getFeatures=False MLP head is implemented.
    key = jax.random.PRNGKey(0)
    k_x, k_p, k_x2 = jax.random.split(key, 3)

    fc_size = 64
    params = init_params(k_p, fc_size)

    # Small single-block case: B=8 -> grid=(1,).
    B = 8
    x = jax.random.normal(k_x, (B, 1000), jnp.float32)   # x.view(-1, 1000)
    out = jax.block_until_ready(snow_classifier_forward(x, params))
    ref = reference_forward(x, params)
    assert out.shape == (B,)
    assert jnp.allclose(out, ref, atol=1e-2, rtol=1e-2)

    # Batched case exercising the grid path: B=160 -> padded to 256, grid=(2,).
    B2 = 160
    x2 = jax.random.normal(k_x2, (B2, 1000), jnp.float32)
    out2 = jax.block_until_ready(snow_classifier_forward(x2, params, block_b=128))
    ref2 = reference_forward(x2, params)
    assert out2.shape == (B2,)
    assert jnp.allclose(out2, ref2, atol=1e-2, rtol=1e-2)

    print("KERNEL_OK")
</pallas_src>

<mosaic_0001>
module attributes {stable_mosaic.version = 11 : i64} {
  func.func @snow_mlp_kernel(%arg0: i32, %arg1: memref<8x1024xbf16, #tpu.memory_space<vmem>>, %arg2: memref<1024x64xbf16, #tpu.memory_space<vmem>>, %arg3: memref<1x64xf32, #tpu.memory_space<vmem>>, %arg4: memref<64x32xbf16, #tpu.memory_space<vmem>>, %arg5: memref<1x32xf32, #tpu.memory_space<vmem>>, %arg6: memref<32x1xf32, #tpu.memory_space<vmem>>, %arg7: memref<1x1xf32, #tpu.memory_space<smem>>, %arg8: memref<1x8xf32, #tpu.memory_space<vmem>>) attributes {dimension_semantics = [#tpu.dimension_semantics<parallel>], iteration_bounds = array<i64: 1>, scalar_prefetch = 0 : i64, scratch_operands = 0 : i64, tpu.core_type = #tpu.core_type<tc>, window_params = [{transform_indices = @transform_0, window_bounds = array<i64: 8, 1024>}, {pipeline_mode = #tpu.pipeline_mode<synchronous>, transform_indices = @transform_1, window_bounds = array<i64: 1024, 64>}, {pipeline_mode = #tpu.pipeline_mode<synchronous>, transform_indices = @transform_2, window_bounds = array<i64: 1, 64>}, {pipeline_mode = #tpu.pipeline_mode<synchronous>, transform_indices = @transform_3, window_bounds = array<i64: 64, 32>}, {pipeline_mode = #tpu.pipeline_mode<synchronous>, transform_indices = @transform_4, window_bounds = array<i64: 1, 32>}, {pipeline_mode = #tpu.pipeline_mode<synchronous>, transform_indices = @transform_5, window_bounds = array<i64: 32, 1>}, {transform_indices = @transform_6, window_bounds = array<i64: 1, 1>}, {transform_indices = @transform_7, window_bounds = array<i64: 1, 8>}]} {
    %c0 = arith.constant 0 : index
    %c0_0 = arith.constant 0 : index
    %0 = vector.load %arg1[%c0, %c0_0] : memref<8x1024xbf16, #tpu.memory_space<vmem>>, vector<8x1024xbf16>
    %c0_1 = arith.constant 0 : index
    %c0_2 = arith.constant 0 : index
    %1 = vector.load %arg2[%c0_1, %c0_2] : memref<1024x64xbf16, #tpu.memory_space<vmem>>, vector<1024x64xbf16>
    %cst = arith.constant dense<0.000000e+00> : vector<8x64xf32>
    %2 = tpu.matmul %0, %1, %cst {dimension_numbers = #tpu.dot_dimension_numbers<[1], [0], [0], [1], [0, 0, 1, 1], [], []>} : vector<8x1024xbf16>, vector<1024x64xbf16>, vector<8x64xf32> -> vector<8x64xf32>
    %c0_3 = arith.constant 0 : index
    %c0_4 = arith.constant 0 : index
    %3 = vector.load %arg3[%c0_3, %c0_4] : memref<1x64xf32, #tpu.memory_space<vmem>>, vector<1x64xf32>
    %4 = vector.broadcast %3 : vector<1x64xf32> to vector<8x64xf32>
    %5 = arith.addf %2, %4 : vector<8x64xf32>
    %cst_5 = arith.constant 0.000000e+00 : f32
    %6 = vector.broadcast %cst_5 : f32 to vector<8x64xf32>
    %7 = arith.cmpf oge, %5, %6 : vector<8x64xf32>
    %cst_6 = arith.constant 0.00999999977 : f32
    %8 = vector.broadcast %cst_6 : f32 to vector<8x64xf32>
    %9 = arith.mulf %8, %5 : vector<8x64xf32>
    %10 = arith.select %7, %5, %9 : vector<8x64xi1>, vector<8x64xf32>
    %11 = arith.truncf %10 : vector<8x64xf32> to vector<8x64xbf16>
    %c0_7 = arith.constant 0 : index
    %c0_8 = arith.constant 0 : index
    %12 = vector.load %arg4[%c0_7, %c0_8] : memref<64x32xbf16, #tpu.memory_space<vmem>>, vector<64x32xbf16>
    %cst_9 = arith.constant dense<0.000000e+00> : vector<8x32xf32>
    %13 = tpu.matmul %11, %12, %cst_9 {dimension_numbers = #tpu.dot_dimension_numbers<[1], [0], [0], [1], [0, 0, 1, 1], [], []>} : vector<8x64xbf16>, vector<64x32xbf16>, vector<8x32xf32> -> vector<8x32xf32>
    %c0_10 = arith.constant 0 : index
    %c0_11 = arith.constant 0 : index
    %14 = vector.load %arg5[%c0_10, %c0_11] : memref<1x32xf32, #tpu.memory_space<vmem>>, vector<1x32xf32>
    %15 = vector.broadcast %14 : vector<1x32xf32> to vector<8x32xf32>
    %16 = arith.addf %13, %15 : vector<8x32xf32>
    %cst_12 = arith.constant 0.000000e+00 : f32
    %17 = vector.broadcast %cst_12 : f32 to vector<8x32xf32>
    %18 = arith.cmpf oge, %16, %17 : vector<8x32xf32>
    %cst_13 = arith.constant 0.00999999977 : f32
    %19 = vector.broadcast %cst_13 : f32 to vector<8x32xf32>
    %20 = arith.mulf %19, %16 : vector<8x32xf32>
    %21 = arith.select %18, %16, %20 : vector<8x32xi1>, vector<8x32xf32>
    %22 = tpu.transpose %21, [1, 0] : vector<8x32xf32> -> vector<32x8xf32>
    %c0_14 = arith.constant 0 : index
    %c0_15 = arith.constant 0 : index
    %23 = vector.load %arg6[%c0_14, %c0_15] : memref<32x1xf32, #tpu.memory_space<vmem>>, vector<32x1xf32>
    %24 = vector.broadcast %23 : vector<32x1xf32> to vector<32x8xf32>
    %25 = arith.mulf %22, %24 : vector<32x8xf32>
    %cst_16 = arith.constant dense<0.000000e+00> : vector<8xf32>
    %26 = vector.multi_reduction <add>, %25, %cst_16 [0] : vector<32x8xf32> to vector<8xf32>
    %27 = vector.shape_cast %26 : vector<8xf32> to vector<1x8xf32>
    %c0_17 = arith.constant 0 : index
    %c0_18 = arith.constant 0 : index
    %28 = memref.load %arg7[%c0_17, %c0_18] : memref<1x1xf32, #tpu.memory_space<smem>>
    %29 = vector.broadcast %28 : f32 to vector<1x8xf32>
    %30 = arith.addf %27, %29 : vector<1x8xf32>
    %c0_19 = arith.constant 0 : index
    %c0_20 = arith.constant 0 : index
    %31 = vector.load %arg8[%c0_19, %c0_20] : memref<1x8xf32, #tpu.memory_space<vmem>>, vector<1x8xf32>
    tpu.vector_store %arg8[%c0_19, %c0_20], %30 {strides = array<i32>} : memref<1x8xf32, #tpu.memory_space<vmem>>, vector<1x8xf32>,
    return
  }
  func.func @transform_0(%arg0: i32) -> (i32, i32) {
    %c0_i32 = arith.constant 0 : i32
    %c0_i32_0 = arith.constant 0 : i32
    return %arg0, %c0_i32 : i32, i32
  }
  func.func @transform_1(%arg0: i32) -> (i32, i32) {
    %c0_i32 = arith.constant 0 : i32
    %c0_i32_0 = arith.constant 0 : i32
    %c0_i32_1 = arith.constant 0 : i32
    return %c0_i32, %c0_i32_0 : i32, i32
  }
  func.func @transform_2(%arg0: i32) -> (i32, i32) {
    %c0_i32 = arith.constant 0 : i32
    %c0_i32_0 = arith.constant 0 : i32
    %c0_i32_1 = arith.constant 0 : i32
    return %c0_i32, %c0_i32_0 : i32, i32
  }
  func.func @transform_3(%arg0: i32) -> (i32, i32) {
    %c0_i32 = arith.constant 0 : i32
    %c0_i32_0 = arith.constant 0 : i32
    %c0_i32_1 = arith.constant 0 : i32
    return %c0_i32, %c0_i32_0 : i32, i32
  }
  func.func @transform_4(%arg0: i32) -> (i32, i32) {
    %c0_i32 = arith.constant 0 : i32
    %c0_i32_0 = arith.constant 0 : i32
    %c0_i32_1 = arith.constant 0 : i32
    return %c0_i32, %c0_i32_0 : i32, i32
  }
  func.func @transform_5(%arg0: i32) -> (i32, i32) {
    %c0_i32 = arith.constant 0 : i32
    %c0_i32_0 = arith.constant 0 : i32
    %c0_i32_1 = arith.constant 0 : i32
    return %c0_i32, %c0_i32_0 : i32, i32
  }
  func.func @transform_6(%arg0: i32) -> (i32, i32) {
    %c0_i32 = arith.constant 0 : i32
    %c0_i32_0 = arith.constant 0 : i32
    %c0_i32_1 = arith.constant 0 : i32
    return %c0_i32, %c0_i32_0 : i32, i32
  }
  func.func @transform_7(%arg0: i32) -> (i32, i32) {
    %c0_i32 = arith.constant 0 : i32
    %c0_i32_0 = arith.constant 0 : i32
    return %c0_i32, %arg0 : i32, i32
  }
}

</mosaic_0001>

<llo_original>
// kernel: tpu_custom_call.1
$region0: #{tpu_custom_call.1}
  #allocation0 [shape = 'u32[]', space=smem, size = 0x4, offset = 0x4, fixed_abs, tag = 'smem constant byte address 0x4 - core index']
  #allocation1 [shape = 'u32[144,128]{1,0:T(1,128)}', space=vmem, size = 0x12000, scoped, tag = 'internal scratch']
  #allocation2 [shape = 'f32[1,1]{1,0:T(1,128)S(6)}', space=smem, size = 0x200, scoped, tag = 'scoped memory for tpu_custom_call.1']
  %s0 = inlined_call_operand.vmem [shape: bf16[8,1024], index: 0, kind: input, shape index: {}]
  %s1 = inlined_call_operand.vmem [shape: bf16[1024,64], index: 1, kind: input, shape index: {}]
  %s2 = inlined_call_operand.vmem [shape: f32[1,64], index: 2, kind: input, shape index: {}]
  %s3 = inlined_call_operand.vmem [shape: bf16[64,32], index: 3, kind: input, shape index: {}]
  %s4 = inlined_call_operand.vmem [shape: f32[1,32], index: 4, kind: input, shape index: {}]
  %s5 = inlined_call_operand.vmem [shape: f32[32,1], index: 5, kind: input, shape index: {}]
  %s6 = inlined_call_operand.<no memory space> [shape: f32[1,1], index: 6, kind: input, shape index: {}]
  %s7 = inlined_call_operand.hbm [shape: f32[1,8], index: 7, kind: output, shape index: {}]
  %s8 = sld [smem:[#allocation0]]
  $region38: #{tpu_custom_call.1} parent=0
    _
  %s10 = ssub.s32 1, %s8
  %s11 = scalar_select 0, %s10, %s8
  %12 = sst [smem:[#allocation2]] %s6
  $region1: #{tpu_custom_call.1} parent=0
    #allocation3 [shape = 'u8[512]{0}', space=vmem, size = 0x400, scoped, tag = 'output window, operand 0, single buffered']
    #allocation4 [shape = 's32[1]{0}', space=sflag, size = 0x4, scoped, tag = 'scoped memory for tpu_custom_call.1']
    %13 = vsyncpa [#allocation4], 0
    // Predicated region
    $region2: #{tpu_custom_call.1} parent=1 // pred_check
      _
    $region3: #{tpu_custom_call.1} parent=1 // pred_check_branch
      %15 = sbr.rel (0) target = $region5
    $region4: #{tpu_custom_call.1} parent=1 // pred_region
      _
    $region5: #{tpu_custom_call.1} parent=1 // pred_fallthru
      _
    // Predicated region
    $region6: #{tpu_custom_call.1} parent=1 // pred_check
      _
    $region7: #{tpu_custom_call.1} parent=1 // pred_check_branch
      %17 = sbr.rel (0) target = $region9
    $region8: #{tpu_custom_call.1} parent=1 // pred_region
      _
    $region9: #{tpu_custom_call.1} parent=1 // pred_fallthru
      _
    // Predicated region
    $region10: #{tpu_custom_call.1} parent=1 // pred_check
      _
    $region11: #{tpu_custom_call.1} parent=1 // pred_check_branch
      %19 = sbr.rel (0) target = $region13
    $region12: #{tpu_custom_call.1} parent=1 // pred_region
      _
    $region13: #{tpu_custom_call.1} parent=1 // pred_fallthru
      _
    // Predicated region
    $region14: #{tpu_custom_call.1} parent=1 // pred_check
      _
    $region15: #{tpu_custom_call.1} parent=1 // pred_check_branch
      %21 = sbr.rel (0) target = $region17
    $region16: #{tpu_custom_call.1} parent=1 // pred_region
      _
    $region17: #{tpu_custom_call.1} parent=1 // pred_fallthru
      _
    // Predicated region
    $region18: #{tpu_custom_call.1} parent=1 // pred_check
      _
    $region19: #{tpu_custom_call.1} parent=1 // pred_check_branch
      %23 = sbr.rel (0) target = $region21
    $region20: #{tpu_custom_call.1} parent=1 // pred_region
      _
    $region21: #{tpu_custom_call.1} parent=1 // pred_fallthru
      _
    // Predicated region
    $region22: #{tpu_custom_call.1} parent=1 // pred_check
      _
    $region23: #{tpu_custom_call.1} parent=1 // pred_check_branch
      %25 = sbr.rel (0) target = $region25
    $region24: #{tpu_custom_call.1} parent=1 // pred_region
      _
    $region25: #{tpu_custom_call.1} parent=1 // pred_fallthru
      _
    // Predicated region
    $region26: #{tpu_custom_call.1} parent=1 // pred_check
      _
    $region27: #{tpu_custom_call.1} parent=1 // pred_check_branch
      %27 = sbr.rel (0) target = $region29
    $region28: #{tpu_custom_call.1} parent=1 // pred_region
      _
    $region29: #{tpu_custom_call.1} parent=1 // pred_fallthru
      _
    %v29 = vld [vmem:[%s0] sm:$0xff]
    %v30 = vld [vmem:[%s0 + $0x8] sm:$0xff]
    %v31 = vld [vmem:[%s0 + $0x10] sm:$0xff]
    %v32 = vld [vmem:[%s0 + $0x18] sm:$0xff]
    %v33 = vld [vmem:[%s1] sm:$0xf]
    %v34 = vld [vmem:[%s1 + $0x4] sm:$0xf]
    %v35 = vld [vmem:[%s1 + $0x8] sm:$0xf]
    %v36 = vld [vmem:[%s1 + $0xc] sm:$0xf]
    %v37 = vld [vmem:[%s1 + $0x10] sm:$0xf]
    %v38 = vld [vmem:[%s1 + $0x14] sm:$0xf]
    %v39 = vld [vmem:[%s1 + $0x18] sm:$0xf]
    %v40 = vld [vmem:[%s1 + $0x1c] sm:$0xf]
    %v41 = vld [vmem:[%s1 + $0x20] sm:$0xf]
    %v42 = vld [vmem:[%s1 + $0x24] sm:$0xf]
    %v43 = vld [vmem:[%s1 + $0x28] sm:$0xf]
    %v44 = vld [vmem:[%s1 + $0x2c] sm:$0xf]
    %v45 = vld [vmem:[%s1 + $0x30] sm:$0xf]
    %v46 = vld [vmem:[%s1 + $0x34] sm:$0xf]
    %v47 = vld [vmem:[%s1 + $0x38] sm:$0xf]
    %v48 = vld [vmem:[%s1 + $0x3c] sm:$0xf]
    %v49 = vld [vmem:[%s1 + $0x40] sm:$0xf]
    %v50 = vld [vmem:[%s1 + $0x44] sm:$0xf]
    %v51 = vld [vmem:[%s1 + $0x48] sm:$0xf]
    %v52 = vld [vmem:[%s1 + $0x4c] sm:$0xf]
    %v53 = vld [vmem:[%s1 + $0x50] sm:$0xf]
    %v54 = vld [vmem:[%s1 + $0x54] sm:$0xf]
    %v55 = vld [vmem:[%s1 + $0x58] sm:$0xf]
    %v56 = vld [vmem:[%s1 + $0x5c] sm:$0xf]
    %v57 = vld [vmem:[%s1 + $0x60] sm:$0xf]
    %v58 = vld [vmem:[%s1 + $0x64] sm:$0xf]
    %v59 = vld [vmem:[%s1 + $0x68] sm:$0xf]
    %v60 = vld [vmem:[%s1 + $0x6c] sm:$0xf]
    %v61 = vld [vmem:[%s1 + $0x70] sm:$0xf]
    %v62 = vld [vmem:[%s1 + $0x74] sm:$0xf]
    %v63 = vld [vmem:[%s1 + $0x78] sm:$0xf]
    %v64 = vld [vmem:[%s1 + $0x7c] sm:$0xf]
    %v65 = vld [vmem:[%s1 + $0x80] sm:$0xf]
    %v66 = vld [vmem:[%s1 + $0x84] sm:$0xf]
    %v67 = vld [vmem:[%s1 + $0x88] sm:$0xf]
    %v68 = vld [vmem:[%s1 + $0x8c] sm:$0xf]
    %v69 = vld [vmem:[%s1 + $0x90] sm:$0xf]
    %v70 = vld [vmem:[%s1 + $0x94] sm:$0xf]
    %v71 = vld [vmem:[%s1 + $0x98] sm:$0xf]
    %v72 = vld [vmem:[%s1 + $0x9c] sm:$0xf]
    %v73 = vld [vmem:[%s1 + $0xa0] sm:$0xf]
    %v74 = vld [vmem:[%s1 + $0xa4] sm:$0xf]
    %v75 = vld [vmem:[%s1 + $0xa8] sm:$0xf]
    %v76 = vld [vmem:[%s1 + $0xac] sm:$0xf]
    %v77 = vld [vmem:[%s1 + $0xb0] sm:$0xf]
    %v78 = vld [vmem:[%s1 + $0xb4] sm:$0xf]
    %v79 = vld [vmem:[%s1 + $0xb8] sm:$0xf]
    %v80 = vld [vmem:[%s1 + $0xbc] sm:$0xf]
    %v81 = vld [vmem:[%s1 + $0xc0] sm:$0xf]
    %v82 = vld [vmem:[%s1 + $0xc4] sm:$0xf]
    %v83 = vld [vmem:[%s1 + $0xc8] sm:$0xf]
    %v84 = vld [vmem:[%s1 + $0xcc] sm:$0xf]
    %v85 = vld [vmem:[%s1 + $0xd0] sm:$0xf]
    %v86 = vld [vmem:[%s1 + $0xd4] sm:$0xf]
    %v87 = vld [vmem:[%s1 + $0xd8] sm:$0xf]
    %v88 = vld [vmem:[%s1 + $0xdc] sm:$0xf]
    %v89 = vld [vmem:[%s1 + $0xe0] sm:$0xf]
    %v90 = vld [vmem:[%s1 + $0xe4] sm:$0xf]
    %v91 = vld [vmem:[%s1 + $0xe8] sm:$0xf]
    %v92 = vld [vmem:[%s1 + $0xec] sm:$0xf]
    %v93 = vld [vmem:[%s1 + $0xf0] sm:$0xf]
    %v94 = vld [vmem:[%s1 + $0xf4] sm:$0xf]
    %v95 = vld [vmem:[%s1 + $0xf8] sm:$0xf]
    %v96 = vld [vmem:[%s1 + $0xfc] sm:$0xf]
    %v97 = vld [vmem:[%s1 + $0x100] sm:$0xf]
    %v98 = vld [vmem:[%s1 + $0x104] sm:$0xf]
    %v99 = vld [vmem:[%s1 + $0x108] sm:$0xf]
    %v100 = vld [vmem:[%s1 + $0x10c] sm:$0xf]
    %v101 = vld [vmem:[%s1 + $0x110] sm:$0xf]
    %v102 = vld [vmem:[%s1 + $0x114] sm:$0xf]
    %v103 = vld [vmem:[%s1 + $0x118] sm:$0xf]
    %v104 = vld [vmem:[%s1 + $0x11c] sm:$0xf]
    %v105 = vld [vmem:[%s1 + $0x120] sm:$0xf]
    %v106 = vld [vmem:[%s1 + $0x124] sm:$0xf]
    %v107 = vld [vmem:[%s1 + $0x128] sm:$0xf]
    %v108 = vld [vmem:[%s1 + $0x12c] sm:$0xf]
    %v109 = vld [vmem:[%s1 + $0x130] sm:$0xf]
    %v110 = vld [vmem:[%s1 + $0x134] sm:$0xf]
    %v111 = vld [vmem:[%s1 + $0x138] sm:$0xf]
    %v112 = vld [vmem:[%s1 + $0x13c] sm:$0xf]
    %v113 = vld [vmem:[%s1 + $0x140] sm:$0xf]
    %v114 = vld [vmem:[%s1 + $0x144] sm:$0xf]
    %v115 = vld [vmem:[%s1 + $0x148] sm:$0xf]
    %v116 = vld [vmem:[%s1 + $0x14c] sm:$0xf]
    %v117 = vld [vmem:[%s1 + $0x150] sm:$0xf]
    %v118 = vld [vmem:[%s1 + $0x154] sm:$0xf]
    %v119 = vld [vmem:[%s1 + $0x158] sm:$0xf]
    %v120 = vld [vmem:[%s1 + $0x15c] sm:$0xf]
    %v121 = vld [vmem:[%s1 + $0x160] sm:$0xf]
    %v122 = vld [vmem:[%s1 + $0x164] sm:$0xf]
    %v123 = vld [vmem:[%s1 + $0x168] sm:$0xf]
    %v124 = vld [vmem:[%s1 + $0x16c] sm:$0xf]
    %v125 = vld [vmem:[%s1 + $0x170] sm:$0xf]
    %v126 = vld [vmem:[%s1 + $0x174] sm:$0xf]
    %v127 = vld [vmem:[%s1 + $0x178] sm:$0xf]
    %v128 = vld [vmem:[%s1 + $0x17c] sm:$0xf]
    %v129 = vld [vmem:[%s1 + $0x180] sm:$0xf]
    %v130 = vld [vmem:[%s1 + $0x184] sm:$0xf]
    %v131 = vld [vmem:[%s1 + $0x188] sm:$0xf]
    %v132 = vld [vmem:[%s1 + $0x18c] sm:$0xf]
    %v133 = vld [vmem:[%s1 + $0x190] sm:$0xf]
    %v134 = vld [vmem:[%s1 + $0x194] sm:$0xf]
    %v135 = vld [vmem:[%s1 + $0x198] sm:$0xf]
    %v136 = vld [vmem:[%s1 + $0x19c] sm:$0xf]
    %v137 = vld [vmem:[%s1 + $0x1a0] sm:$0xf]
    %v138 = vld [vmem:[%s1 + $0x1a4] sm:$0xf]
    %v139 = vld [vmem:[%s1 + $0x1a8] sm:$0xf]
    %v140 = vld [vmem:[%s1 + $0x1ac] sm:$0xf]
    %v141 = vld [vmem:[%s1 + $0x1b0] sm:$0xf]
    %v142 = vld [vmem:[%s1 + $0x1b4] sm:$0xf]
    %v143 = vld [vmem:[%s1 + $0x1b8] sm:$0xf]
    %v144 = vld [vmem:[%s1 + $0x1bc] sm:$0xf]
    %v145 = vld [vmem:[%s1 + $0x1c0] sm:$0xf]
    %v146 = vld [vmem:[%s1 + $0x1c4] sm:$0xf]
    %v147 = vld [vmem:[%s1 + $0x1c8] sm:$0xf]
    %v148 = vld [vmem:[%s1 + $0x1cc] sm:$0xf]
    %v149 = vld [vmem:[%s1 + $0x1d0] sm:$0xf]
    %v150 = vld [vmem:[%s1 + $0x1d4] sm:$0xf]
    %v151 = vld [vmem:[%s1 + $0x1d8] sm:$0xf]
    %v152 = vld [vmem:[%s1 + $0x1dc] sm:$0xf]
    %v153 = vld [vmem:[%s1 + $0x1e0] sm:$0xf]
    %v154 = vld [vmem:[%s1 + $0x1e4] sm:$0xf]
    %v155 = vld [vmem:[%s1 + $0x1e8] sm:$0xf]
    %v156 = vld [vmem:[%s1 + $0x1ec] sm:$0xf]
    %v157 = vld [vmem:[%s1 + $0x1f0] sm:$0xf]
    %v158 = vld [vmem:[%s1 + $0x1f4] sm:$0xf]
    %v159 = vld [vmem:[%s1 + $0x1f8] sm:$0xf]
    %v160 = vld [vmem:[%s1 + $0x1fc] sm:$0xf]
    %v161 = vld [vmem:[%s2] sm:$0x1]
    %v163 = vlaneseq
    %v164 = vshrl.u32 %v163, 7
    %v165 = vsub.s32 0, %v164
    %v166 = vrot.slane %v161, %v165
    %v172 = vunpack.c.l.b16 %v29
    %v173 = vunpack.c.h.b16 %v29
    %v174 = vunpack.c.l.b16 %v30
    %v175 = vunpack.c.h.b16 %v30
    %v176 = vunpack.c.l.b16 %v31
    %v177 = vunpack.c.h.b16 %v31
    %v178 = vunpack.c.l.b16 %v32
    %v179 = vunpack.c.h.b16 %v32
    %v180 = vpack.c.b16 %v172, %v172
    %v181 = vpack.c.b16 %v173, %v173
    %v182 = vpack.c.b16 %v174, %v174
    %v183 = vpack.c.b16 %v175, %v175
    %v184 = vpack.c.b16 %v176, %v176
    %v185 = vpack.c.b16 %v177, %v177
    %v186 = vpack.c.b16 %v178, %v178
    %v187 = vpack.c.b16 %v179, %v179
    %v324 = vunpack.c.l.b16 %v33
    %v325 = vunpack.c.l.b16 %v34
    %v326 = vunpack.c.l.b16 %v35
    %v327 = vunpack.c.l.b16 %v36
    %v328 = vunpack.c.l.b16 %v37
    %v329 = vunpack.c.l.b16 %v38
    %v330 = vunpack.c.l.b16 %v39
    %v331 = vunpack.c.l.b16 %v40
    %v332 = vunpack.c.l.b16 %v41
    %v333 = vunpack.c.l.b16 %v42
    %v334 = vunpack.c.l.b16 %v43
    %v335 = vunpack.c.l.b16 %v44
    %v336 = vunpack.c.l.b16 %v45
    %v337 = vunpack.c.l.b16 %v46
    %v338 = vunpack.c.l.b16 %v47
    %v339 = vunpack.c.l.b16 %v48
    %v340 = vunpack.c.l.b16 %v49
    %v341 = vunpack.c.l.b16 %v50
    %v342 = vunpack.c.l.b16 %v51
    %v343 = vunpack.c.l.b16 %v52
    %v344 = vunpack.c.l.b16 %v53
    %v345 = vunpack.c.l.b16 %v54
    %v346 = vunpack.c.l.b16 %v55
    %v347 = vunpack.c.l.b16 %v56
    %v348 = vunpack.c.l.b16 %v57
    %v349 = vunpack.c.l.b16 %v58
    %v350 = vunpack.c.l.b16 %v59
    %v351 = vunpack.c.l.b16 %v60
    %v352 = vunpack.c.l.b16 %v61
    %v353 = vunpack.c.l.b16 %v62
    %v354 = vunpack.c.l.b16 %v63
    %v355 = vunpack.c.l.b16 %v64
    %v356 = vunpack.c.l.b16 %v65
    %v357 = vunpack.c.l.b16 %v66
    %v358 = vunpack.c.l.b16 %v67
    %v359 = vunpack.c.l.b16 %v68
    %v360 = vunpack.c.l.b16 %v69
    %v361 = vunpack.c.l.b16 %v70
    %v362 = vunpack.c.l.b16 %v71
    %v363 = vunpack.c.l.b16 %v72
    %v364 = vunpack.c.l.b16 %v73
    %v365 = vunpack.c.l.b16 %v74
    %v366 = vunpack.c.l.b16 %v75
    %v367 = vunpack.c.l.b16 %v76
    %v368 = vunpack.c.l.b16 %v77
    %v369 = vunpack.c.l.b16 %v78
    %v370 = vunpack.c.l.b16 %v79
    %v371 = vunpack.c.l.b16 %v80
    %v372 = vunpack.c.l.b16 %v81
    %v373 = vunpack.c.l.b16 %v82
    %v374 = vunpack.c.l.b16 %v83
    %v375 = vunpack.c.l.b16 %v84
    %v376 = vunpack.c.l.b16 %v85
    %v377 = vunpack.c.l.b16 %v86
    %v378 = vunpack.c.l.b16 %v87
    %v379 = vunpack.c.l.b16 %v88
    %v380 = vunpack.c.l.b16 %v89
    %v381 = vunpack.c.l.b16 %v90
    %v382 = vunpack.c.l.b16 %v91
    %v383 = vunpack.c.l.b16 %v92
    %v384 = vunpack.c.l.b16 %v93
    %v385 = vunpack.c.l.b16 %v94
    %v386 = vunpack.c.l.b16 %v95
    %v387 = vunpack.c.l.b16 %v96
    %v388 = vunpack.c.l.b16 %v97
    %v389 = vunpack.c.l.b16 %v98
    %v390 = vunpack.c.l.b16 %v99
    %v391 = vunpack.c.l.b16 %v100
    %v392 = vunpack.c.l.b16 %v101
    %v393 = vunpack.c.l.b16 %v102
    %v394 = vunpack.c.l.b16 %v103
    %v395 = vunpack.c.l.b16 %v104
    %v396 = vunpack.c.l.b16 %v105
    %v397 = vunpack.c.l.b16 %v106
    %v398 = vunpack.c.l.b16 %v107
    %v399 = vunpack.c.l.b16 %v108
    %v400 = vunpack.c.l.b16 %v109
    %v401 = vunpack.c.l.b16 %v110
    %v402 = vunpack.c.l.b16 %v111
    %v403 = vunpack.c.l.b16 %v112
    %v404 = vunpack.c.l.b16 %v113
    %v405 = vunpack.c.l.b16 %v114
    %v406 = vunpack.c.l.b16 %v115
    %v407 = vunpack.c.l.b16 %v116
    %v408 = vunpack.c.l.b16 %v117
    %v409 = vunpack.c.l.b16 %v118
    %v410 = vunpack.c.l.b16 %v119
    %v411 = vunpack.c.l.b16 %v120
    %v412 = vunpack.c.l.b16 %v121
    %v413 = vunpack.c.l.b16 %v122
    %v414 = vunpack.c.l.b16 %v123
    %v415 = vunpack.c.l.b16 %v124
    %v416 = vunpack.c.l.b16 %v125
    %v417 = vunpack.c.l.b16 %v126
    %v418 = vunpack.c.l.b16 %v127
    %v419 = vunpack.c.l.b16 %v128
    %v420 = vunpack.c.l.b16 %v129
    %v421 = vunpack.c.l.b16 %v130
    %v422 = vunpack.c.l.b16 %v131
    %v423 = vunpack.c.l.b16 %v132
    %v424 = vunpack.c.l.b16 %v133
    %v425 = vunpack.c.l.b16 %v134
    %v426 = vunpack.c.l.b16 %v135
    %v427 = vunpack.c.l.b16 %v136
    %v428 = vunpack.c.l.b16 %v137
    %v429 = vunpack.c.l.b16 %v138
    %v430 = vunpack.c.l.b16 %v139
    %v431 = vunpack.c.l.b16 %v140
    %v432 = vunpack.c.l.b16 %v141
    %v433 = vunpack.c.l.b16 %v142
    %v434 = vunpack.c.l.b16 %v143
    %v435 = vunpack.c.l.b16 %v144
    %v436 = vunpack.c.l.b16 %v145
    %v437 = vunpack.c.l.b16 %v146
    %v438 = vunpack.c.l.b16 %v147
    %v439 = vunpack.c.l.b16 %v148
    %v440 = vunpack.c.l.b16 %v149
    %v441 = vunpack.c.l.b16 %v150
    %v442 = vunpack.c.l.b16 %v151
    %v443 = vunpack.c.l.b16 %v152
    %v444 = vunpack.c.l.b16 %v153
    %v445 = vunpack.c.l.b16 %v154
    %v446 = vunpack.c.l.b16 %v155
    %v447 = vunpack.c.l.b16 %v156
    %v448 = vunpack.c.l.b16 %v157
    %v449 = vunpack.c.l.b16 %v158
    %v450 = vunpack.c.l.b16 %v159
    %v451 = vunpack.c.l.b16 %v160
    %v452 = vpack.c.b16 %v325, %v324
    %v453 = vpack.c.b16 %v327, %v326
    %v454 = vpack.c.b16 %v329, %v328
    %v455 = vpack.c.b16 %v331, %v330
    %v456 = vpack.c.b16 %v333, %v332
    %v457 = vpack.c.b16 %v335, %v334
    %v458 = vpack.c.b16 %v337, %v336
    %v459 = vpack.c.b16 %v339, %v338
    %v460 = vpack.c.b16 %v341, %v340
    %v461 = vpack.c.b16 %v343, %v342
    %v462 = vpack.c.b16 %v345, %v344
    %v463 = vpack.c.b16 %v347, %v346
    %v464 = vpack.c.b16 %v349, %v348
    %v465 = vpack.c.b16 %v351, %v350
    %v466 = vpack.c.b16 %v353, %v352
    %v467 = vpack.c.b16 %v355, %v354
    %v468 = vpack.c.b16 %v357, %v356
    %v469 = vpack.c.b16 %v359, %v358
    %v470 = vpack.c.b16 %v361, %v360
    %v471 = vpack.c.b16 %v363, %v362
    %v472 = vpack.c.b16 %v365, %v364
    %v473 = vpack.c.b16 %v367, %v366
    %v474 = vpack.c.b16 %v369, %v368
    %v475 = vpack.c.b16 %v371, %v370
    %v476 = vpack.c.b16 %v373, %v372
    %v477 = vpack.c.b16 %v375, %v374
    %v478 = vpack.c.b16 %v377, %v376
    %v479 = vpack.c.b16 %v379, %v378
    %v480 = vpack.c.b16 %v381, %v380
    %v481 = vpack.c.b16 %v383, %v382
    %v482 = vpack.c.b16 %v385, %v384
    %v483 = vpack.c.b16 %v387, %v386
    %v484 = vpack.c.b16 %v389, %v388
    %v485 = vpack.c.b16 %v391, %v390
    %v486 = vpack.c.b16 %v393, %v392
    %v487 = vpack.c.b16 %v395, %v394
    %v488 = vpack.c.b16 %v397, %v396
    %v489 = vpack.c.b16 %v399, %v398
    %v490 = vpack.c.b16 %v401, %v400
    %v491 = vpack.c.b16 %v403, %v402
    %v492 = vpack.c.b16 %v405, %v404
    %v493 = vpack.c.b16 %v407, %v406
    %v494 = vpack.c.b16 %v409, %v408
    %v495 = vpack.c.b16 %v411, %v410
    %v496 = vpack.c.b16 %v413, %v412
    %v497 = vpack.c.b16 %v415, %v414
    %v498 = vpack.c.b16 %v417, %v416
    %v499 = vpack.c.b16 %v419, %v418
    %v500 = vpack.c.b16 %v421, %v420
    %v501 = vpack.c.b16 %v423, %v422
    %v502 = vpack.c.b16 %v425, %v424
    %v503 = vpack.c.b16 %v427, %v426
    %v504 = vpack.c.b16 %v429, %v428
    %v505 = vpack.c.b16 %v431, %v430
    %v506 = vpack.c.b16 %v433, %v432
    %v507 = vpack.c.b16 %v435, %v434
    %v508 = vpack.c.b16 %v437, %v436
    %v509 = vpack.c.b16 %v439, %v438
    %v510 = vpack.c.b16 %v441, %v440
    %v511 = vpack.c.b16 %v443, %v442
    %v512 = vpack.c.b16 %v445, %v444
    %v513 = vpack.c.b16 %v447, %v446
    %v514 = vpack.c.b16 %v449, %v448
    %v515 = vpack.c.b16 %v451, %v450
    %580 = vmatprep.subr.bf16.mxu0 0
    %581 = vmatpush1.bf16.msra.mxu0 %v459
    %582 = vmatprep.subr.bf16.mxu0 0
    %583 = vmatpush1.bf16.msra.mxu0 %v458
    %584 = vmatprep.subr.bf16.mxu0 0
    %585 = vmatpush1.bf16.msra.mxu0 %v457
    %586 = vmatprep.subr.bf16.mxu0 0
    %587 = vmatpush1.bf16.msra.mxu0 %v456
    %588 = vmatprep.subr.bf16.mxu0 0
    %589 = vmatpush1.bf16.msra.mxu0 %v455
    %590 = vmatprep.subr.bf16.mxu0 0
    %591 = vmatpush1.bf16.msra.mxu0 %v454
    %592 = vmatprep.subr.bf16.mxu0 0
    %593 = vmatpush1.bf16.msra.mxu0 %v453
    %594 = vmatprep.subr.bf16.mxu0 0
    %595 = vmatpush1.bf16.msra.mxu0 %v452
    %596 = vmatprep.subr.bf16.mxu0 0
    %597 = vmatpush2.bf16.msra.mxu0 %v467
    %598 = vmatprep.subr.bf16.mxu0 0
    %599 = vmatpush2.bf16.msra.mxu0 %v466
    %600 = vmatprep.subr.bf16.mxu0 0
    %601 = vmatpush2.bf16.msra.mxu0 %v465
    %602 = vmatprep.subr.bf16.mxu0 0
    %603 = vmatpush2.bf16.msra.mxu0 %v464
    %604 = vmatprep.subr.bf16.mxu0 0
    %605 = vmatpush2.bf16.msra.mxu0 %v463
    %606 = vmatprep.subr.bf16.mxu0 0
    %607 = vmatpush2.bf16.msra.mxu0 %v462
    %608 = vmatprep.subr.bf16.mxu0 0
    %609 = vmatpush2.bf16.msra.mxu0 %v461
    %610 = vmatprep.subr.bf16.mxu0 0
    %611 = vmatpush2.bf16.msra.mxu0 %v460
    %612 = vmatprep.mubr.bf16.mxu0 %v181
    %613 = vmatmul.mubr.bf16.gmra.mxu0 %v180
    %v614 = vpop.f32.mrf.mxu0
    %v615 = vadd.f32 %v166, %v614
    %v616 = vpop.f32.mrf.mxu0
    %v617 = vpop.f32.mrf.mxu0
    %v618 = vpop.f32.mrf.mxu0
    %619 = vdwg.mxu0
    %620 = vmatprep.subr.bf16.mxu0 0
    %621 = vmatpush1.bf16.msra.mxu0 %v475
    %622 = vmatprep.subr.bf16.mxu0 0
    %623 = vmatpush1.bf16.msra.mxu0 %v474
    %624 = vmatprep.subr.bf16.mxu0 0
    %625 = vmatpush1.bf16.msra.mxu0 %v473
    %626 = vmatprep.subr.bf16.mxu0 0
    %627 = vmatpush1.bf16.msra.mxu0 %v472
    %628 = vmatprep.subr.bf16.mxu0 0
    %629 = vmatpush1.bf16.msra.mxu0 %v471
    %630 = vmatprep.subr.bf16.mxu0 0
    %631 = vmatpush1.bf16.msra.mxu0 %v470
    %632 = vmatprep.subr.bf16.mxu0 0
    %633 = vmatpush1.bf16.msra.mxu0 %v469
    %634 = vmatprep.subr.bf16.mxu0 0
    %635 = vmatpush1.bf16.msra.mxu0 %v468
    %636 = vmatprep.subr.bf16.mxu0 0
    %637 = vmatpush2.bf16.msra.mxu0 %v483
    %638 = vmatprep.subr.bf16.mxu0 0
    %639 = vmatpush2.bf16.msra.mxu0 %v482
    %640 = vmatprep.subr.bf16.mxu0 0
    %641 = vmatpush2.bf16.msra.mxu0 %v481
    %642 = vmatprep.subr.bf16.mxu0 0
    %643 = vmatpush2.bf16.msra.mxu0 %v480
    %644 = vmatprep.subr.bf16.mxu0 0
    %645 = vmatpush2.bf16.msra.mxu0 %v479
    %646 = vmatprep.subr.bf16.mxu0 0
    %647 = vmatpush2.bf16.msra.mxu0 %v478
    %648 = vmatprep.subr.bf16.mxu0 0
    %649 = vmatpush2.bf16.msra.mxu0 %v477
    %650 = vmatprep.subr.bf16.mxu0 0
    %651 = vmatpush2.bf16.msra.mxu0 %v476
    %652 = vmatprep.mubr.bf16.mxu0 %v183
    %653 = vmatmul.mubr.bf16.gmra.mxu0 %v182
    %v654 = vpop.f32.mrf.mxu0
    %v655 = vadd.f32 %v615, %v654
    %v656 = vpop.f32.mrf.mxu0
    %v657 = vpop.f32.mrf.mxu0
    %v658 = vpop.f32.mrf.mxu0
    %659 = vdwg.mxu0
    %660 = vmatprep.subr.bf16.mxu0 0
    %661 = vmatpush1.bf16.msra.mxu0 %v491
    %662 = vmatprep.subr.bf16.mxu0 0
    %663 = vmatpush1.bf16.msra.mxu0 %v490
    %664 = vmatprep.subr.bf16.mxu0 0
    %665 = vmatpush1.bf16.msra.mxu0 %v489
    %666 = vmatprep.subr.bf16.mxu0 0
    %667 = vmatpush1.bf16.msra.mxu0 %v488
    %668 = vmatprep.subr.bf16.mxu0 0
    %669 = vmatpush1.bf16.msra.mxu0 %v487
    %670 = vmatprep.subr.bf16.mxu0 0
    %671 = vmatpush1.bf16.msra.mxu0 %v486
    %672 = vmatprep.subr.bf16.mxu0 0
    %673 = vmatpush1.bf16.msra.mxu0 %v485
    %674 = vmatprep.subr.bf16.mxu0 0
    %675 = vmatpush1.bf16.msra.mxu0 %v484
    %676 = vmatprep.subr.bf16.mxu0 0
    %677 = vmatpush2.bf16.msra.mxu0 %v499
    %678 = vmatprep.subr.bf16.mxu0 0
    %679 = vmatpush2.bf16.msra.mxu0 %v498
    %680 = vmatprep.subr.bf16.mxu0 0
    %681 = vmatpush2.bf16.msra.mxu0 %v497
    %682 = vmatprep.subr.bf16.mxu0 0
    %683 = vmatpush2.bf16.msra.mxu0 %v496
    %684 = vmatprep.subr.bf16.mxu0 0
    %685 = vmatpush2.bf16.msra.mxu0 %v495
    %686 = vmatprep.subr.bf16.mxu0 0
    %687 = vmatpush2.bf16.msra.mxu0 %v494
    %688 = vmatprep.subr.bf16.mxu0 0
    %689 = vmatpush2.bf16.msra.mxu0 %v493
    %690 = vmatprep.subr.bf16.mxu0 0
    %691 = vmatpush2.bf16.msra.mxu0 %v492
    %692 = vmatprep.mubr.bf16.mxu0 %v185
    %693 = vmatmul.mubr.bf16.gmra.mxu0 %v184
    %v694 = vpop.f32.mrf.mxu0
    %v695 = vadd.f32 %v655, %v694
    %v696 = vpop.f32.mrf.mxu0
    %v697 = vpop.f32.mrf.mxu0
    %v698 = vpop.f32.mrf.mxu0
    %699 = vdwg.mxu0
    %700 = vmatprep.subr.bf16.mxu0 0
    %701 = vmatpush1.bf16.msra.mxu0 %v507
    %702 = vmatprep.subr.bf16.mxu0 0
    %703 = vmatpush1.bf16.msra.mxu0 %v506
    %704 = vmatprep.subr.bf16.mxu0 0
    %705 = vmatpush1.bf16.msra.mxu0 %v505
    %706 = vmatprep.subr.bf16.mxu0 0
    %707 = vmatpush1.bf16.msra.mxu0 %v504
    %708 = vmatprep.subr.bf16.mxu0 0
    %709 = vmatpush1.bf16.msra.mxu0 %v503
    %710 = vmatprep.subr.bf16.mxu0 0
    %711 = vmatpush1.bf16.msra.mxu0 %v502
    %712 = vmatprep.subr.bf16.mxu0 0
    %713 = vmatpush1.bf16.msra.mxu0 %v501
    %714 = vmatprep.subr.bf16.mxu0 0
    %715 = vmatpush1.bf16.msra.mxu0 %v500
    %716 = vmatprep.subr.bf16.mxu0 0
    %717 = vmatpush2.bf16.msra.mxu0 %v515
    %718 = vmatprep.subr.bf16.mxu0 0
    %719 = vmatpush2.bf16.msra.mxu0 %v514
    %720 = vmatprep.subr.bf16.mxu0 0
    %721 = vmatpush2.bf16.msra.mxu0 %v513
    %722 = vmatprep.subr.bf16.mxu0 0
    %723 = vmatpush2.bf16.msra.mxu0 %v512
    %724 = vmatprep.subr.bf16.mxu0 0
    %725 = vmatpush2.bf16.msra.mxu0 %v511
    %726 = vmatprep.subr.bf16.mxu0 0
    %727 = vmatpush2.bf16.msra.mxu0 %v510
    %728 = vmatprep.subr.bf16.mxu0 0
    %729 = vmatpush2.bf16.msra.mxu0 %v509
    %730 = vmatprep.subr.bf16.mxu0 0
    %731 = vmatpush2.bf16.msra.mxu0 %v508
    %732 = vmatprep.mubr.bf16.mxu0 %v187
    %733 = vmatmul.mubr.bf16.gmra.mxu0 %v186
    %v734 = vpop.f32.mrf.mxu0
    %v735 = vadd.f32 %v695, %v734
    %v736 = vpop.f32.mrf.mxu0
    %v737 = vpop.f32.mrf.mxu0
    %v738 = vpop.f32.mrf.mxu0
    %739 = vdwg.mxu0
    %vm740 = vcmp.ge.f32.partialorder %v735, 0.0
    %v741 = vmul.f32 %v735, 0.01
    %v742 = vsel %vm740, %v735, %v741
    %v743 = vpack.c.bf16 %v742, %v742
    %v744 = vld [vmem:[%s3] sm:$0xf]
    %v745 = vld [vmem:[%s3 + $0x4] sm:$0xf]
    %v746 = vld [vmem:[%s3 + $0x8] sm:$0xf]
    %v747 = vld [vmem:[%s3 + $0xc] sm:$0xf]
    %v748 = vld [vmem:[%s3 + $0x10] sm:$0xf]
    %v749 = vld [vmem:[%s3 + $0x14] sm:$0xf]
    %v750 = vld [vmem:[%s3 + $0x18] sm:$0xf]
    %v751 = vld [vmem:[%s3 + $0x1c] sm:$0xf]
    %v752 = vld [vmem:[%s4] sm:$0x1]
    %v754 = vlaneseq
    %v755 = vshrl.u32 %v754, 7
    %v756 = vsub.s32 0, %v755
    %v757 = vrot.slane %v752, %v756
    %v767 = vunpack.c.l.b16 %v744
    %v768 = vunpack.c.l.b16 %v745
    %v769 = vunpack.c.l.b16 %v746
    %v770 = vunpack.c.l.b16 %v747
    %v771 = vunpack.c.l.b16 %v748
    %v772 = vunpack.c.l.b16 %v749
    %v773 = vunpack.c.l.b16 %v750
    %v774 = vunpack.c.l.b16 %v751
    %v775 = vpack.c.b16 %v768, %v767
    %v776 = vpack.c.b16 %v770, %v769
    %v777 = vpack.c.b16 %v772, %v771
    %v778 = vpack.c.b16 %v774, %v773
    %vm783 = vcmask 523264
    %v785 = vsel %vm783, %v743, 0
    %787 = vmatprep.subr.bf16.mxu0 0
    %788 = vmatpush1.bf16.msra.mxu0 0
    %789 = vmatprep.subr.bf16.mxu0 0
    %790 = vmatpush1.bf16.msra.mxu0 0
    %791 = vmatprep.subr.bf16.mxu0 0
    %792 = vmatpush1.bf16.msra.mxu0 0
    %793 = vmatprep.subr.bf16.mxu0 0
    %794 = vmatpush1.bf16.msra.mxu0 0
    %795 = vmatprep.subr.bf16.mxu0 0
    %796 = vmatpush1.bf16.msra.mxu0 %v778
    %797 = vmatprep.subr.bf16.mxu0 0
    %798 = vmatpush1.bf16.msra.mxu0 %v777
    %799 = vmatprep.subr.bf16.mxu0 0
    %800 = vmatpush1.bf16.msra.mxu0 %v776
    %801 = vmatprep.subr.bf16.mxu0 0
    %802 = vmatpush1.bf16.msra.mxu0 %v775
    %803 = vmatprep.subr.bf16.mxu0 0
    %804 = vmatpush2.bf16.msra.mxu0 0
    %805 = vmatprep.subr.bf16.mxu0 0
    %806 = vmatpush2.bf16.msra.mxu0 0
    %807 = vmatprep.subr.bf16.mxu0 0
    %808 = vmatpush2.bf16.msra.mxu0 0
    %809 = vmatprep.subr.bf16.mxu0 0
    %810 = vmatpush2.bf16.msra.mxu0 0
    %811 = vmatprep.subr.bf16.mxu0 0
    %812 = vmatpush2.bf16.msra.mxu0 0
    %813 = vmatprep.subr.bf16.mxu0 0
    %814 = vmatpush2.bf16.msra.mxu0 0
    %815 = vmatprep.subr.bf16.mxu0 0
    %816 = vmatpush2.bf16.msra.mxu0 0
    %817 = vmatprep.subr.bf16.mxu0 0
    %818 = vmatpush2.bf16.msra.mxu0 0
    %819 = vmatprep.mubr.bf16.mxu0 0
    %820 = vmatmul.mubr.bf16.gmra.mxu0 %v785
    %v821 = vpop.f32.mrf.mxu0
    %v822 = vadd.f32 %v757, %v821
    %v823 = vpop.f32.mrf.mxu0
    %v824 = vpop.f32.mrf.mxu0
    %v825 = vpop.f32.mrf.mxu0
    %826 = vdwg.mxu0
    %vm827 = vcmp.ge.f32.partialorder %v822, 0.0
    %v828 = vmul.f32 %v822, 0.01
    %v829 = vsel %vm827, %v822, %v828
    %830 = vxpose.xlu0.b32.start [1/16] %v829, 128
    %831 = vxpose.xlu0.b32.cont [2/16] 0.0, 128
    %832 = vxpose.xlu0.b32.cont [3/16] 0.0, 128
    %833 = vxpose.xlu0.b32.cont [4/16] 0.0, 128
    %834 = vxpose.xlu0.b32.cont [5/16] 0.0, 128
    %835 = vxpose.xlu0.b32.cont [6/16] 0.0, 128
    %836 = vxpose.xlu0.b32.cont [7/16] 0.0, 128
    %837 = vxpose.xlu0.b32.cont [8/16] 0.0, 128
    %838 = vxpose.xlu0.b32.cont [9/16] 0.0, 128
    %839 = vxpose.xlu0.b32.cont [10/16] 0.0, 128
    %840 = vxpose.xlu0.b32.cont [11/16] 0.0, 128
    %841 = vxpose.xlu0.b32.cont [12/16] 0.0, 128
    %842 = vxpose.xlu0.b32.cont [13/16] 0.0, 128
    %843 = vxpose.xlu0.b32.cont [14/16] 0.0, 128
    %844 = vxpose.xlu0.b32.cont [15/16] 0.0, 128
    %845 = vxpose.xlu0.b32.end [16/16] 0.0, 128
    %v846 = vpop.trf.xlu0
    %v847 = vpop.trf.xlu0
    %v848 = vpop.trf.xlu0
    %v849 = vpop.trf.xlu0
    %v850 = vpop.trf.xlu0
    %v851 = vpop.trf.xlu0
    %v852 = vpop.trf.xlu0
    %v853 = vpop.trf.xlu0
    %v854 = vpop.trf.xlu0
    %v855 = vpop.trf.xlu0
    %v856 = vpop.trf.xlu0
    %v857 = vpop.trf.xlu0
    %v858 = vpop.trf.xlu0
    %v859 = vpop.trf.xlu0
    %v860 = vpop.trf.xlu0
    %v861 = vpop.trf.xlu0
    %v862 = vld [vmem:[%s5] sm:$0xff]
    %v863 = vld [vmem:[%s5 + $0x8] sm:$0xff]
    %v864 = vld [vmem:[%s5 + $0x10] sm:$0xff]
    %v865 = vld [vmem:[%s5 + $0x18] sm:$0xff]
    %867 = vset.pattern.permute.xlu0 0
    %868 = vperm.xlu0 %867, %v862
    %v869 = vpop.permute.xlu0 %868
    %872 = vset.pattern.permute.xlu0 0
    %873 = vperm.xlu0 %872, %v863
    %v874 = vpop.permute.xlu0 %873
    %877 = vset.pattern.permute.xlu0 0
    %878 = vperm.xlu0 %877, %v864
    %v879 = vpop.permute.xlu0 %878
    %882 = vset.pattern.permute.xlu0 0
    %883 = vperm.xlu0 %882, %v865
    %v884 = vpop.permute.xlu0 %883
    %v886 = vmul.f32 %v846, %v869
    %v887 = vmul.f32 %v847, %v874
    %v888 = vmul.f32 %v848, %v879
    %v889 = vmul.f32 %v849, %v884
    %vm890 = vcmask 64512
    %v891 = vsel %vm890, %v886, 0.0
    %v892 = vsel %vm890, %v887, 0.0
    %v893 = vadd.f32 %v891, %v892
    %v894 = vsel %vm890, %v888, 0.0
    %v895 = vadd.f32 %v893, %v894
    %v896 = vsel %vm890, %v889, 0.0
    %v897 = vadd.f32 %v895, %v896
    %v898 = vrot.slane %v897, 4
    %v899 = vadd.f32 %v897, %v898
    %v900 = vrot.slane %v899, 2
    %v901 = vadd.f32 %v899, %v900
    %v902 = vrot.slane %v901, 1
    %v903 = vadd.f32 %v901, %v902
    %s904 = sld [smem:[#allocation2]]
    %v905 = vstv %s904
    %v906 = vadd.f32 %v903, %v905
    %vm907 = vcmask 57344
    %908 = vst.msk [vmem:[#allocation3] sm:$0x1] %vm907, %v906
    // Predicated region
    $region30: #{tpu_custom_call.1} parent=1 // pred_check
      _
    $region31: #{tpu_custom_call.1} parent=1 // pred_check_branch
      %910 = sbr.rel (0) target = $region33
    $region32: #{tpu_custom_call.1} parent=1 // pred_region
      %s912 = ssub.s32 16, 16
      %913 = vsyncadd [#allocation4], %s912
      %s915 = sshll.u32 [#allocation3], 4
      %s916 = int_to_ptr.vmem [resolvable:$true] %s915
      %918 = dma.vmem_to_hbm [thread:$0]  %s916, 16, %s7, [#allocation4]
    $region33: #{tpu_custom_call.1} parent=1 // pred_fallthru
      _
    // Predicated region
    $region34: #{tpu_custom_call.1} parent=1 // pred_check
      _
    $region35: #{tpu_custom_call.1} parent=1 // pred_check_branch
      %920 = sbr.rel (0) target = $region37
    $region36: #{tpu_custom_call.1} parent=1 // pred_region
      %921 = dma.done [#allocation4], 16
    $region37: #{tpu_custom_call.1} parent=1 // pred_fallthru
      _
    %922 = vsyncpa [#allocation4], 1

</llo_original>
